<compile_context>
chip_gen: v6e
topology: v6e:2x2x1
jax: 0.10.0
libtpu: 0.0.40
codegen_flags: <defaults>
</compile_context>

<pallas_src>
import functools

import jax
import jax.numpy as jnp
from jax.experimental import pallas as pl
from jax.experimental.pallas import tpu as pltpu

BN_EPS = 1e-5
_LANE = 128
_VMEM_LIMIT = 32 * 1024 * 1024  # explicit; tiny footprint, safe on v5e/v6e/v7x


# --------------------------------------------------------------------------- #
# Pass 1: global batch statistics of z1 = x1 @ w1 + b1
# --------------------------------------------------------------------------- #
def _bn_stats_kernel(x1_ref, w1_ref, b1_ref, mean_ref, rstd_ref, *, batch_size):
    i = pl.program_id(0)

    @pl.when(i == 0)
    def _init():
        mean_ref[...] = jnp.zeros_like(mean_ref)
        rstd_ref[...] = jnp.zeros_like(rstd_ref)

    z1 = (jnp.dot(x1_ref[...], w1_ref[...], preferred_element_type=jnp.float32)
          + b1_ref[...])
    mean_ref[...] += jnp.sum(z1, axis=0, keepdims=True)       # running col-sum
    rstd_ref[...] += jnp.sum(z1 * z1, axis=0, keepdims=True)  # running col-sumsq

    @pl.when(i == pl.num_programs(0) - 1)
    def _finalize():
        inv_b = jnp.float32(1.0 / batch_size)
        mean = mean_ref[...] * inv_b
        var = jnp.maximum(rstd_ref[...] * inv_b - mean * mean, 0.0)  # biased var
        mean_ref[...] = mean
        rstd_ref[...] = jax.lax.rsqrt(var + BN_EPS)


# --------------------------------------------------------------------------- #
# Pass 2: normalize (global stats) -> ReLU -> fc2 on [h1, x2]
# --------------------------------------------------------------------------- #
def _fcnn_apply_kernel(x1_ref, x2_ref, mean_ref, rstd_ref, w1_ref, b1_ref,
                       gamma_ref, beta_ref, w2h_ref, w2p_ref, b2_ref, out_ref):
    z1 = (jnp.dot(x1_ref[...], w1_ref[...], preferred_element_type=jnp.float32)
          + b1_ref[...])
    h1 = jnp.maximum(
        (z1 - mean_ref[...]) * rstd_ref[...] * gamma_ref[...] + beta_ref[...],
        0.0)
    # fc2 (out_features == 1): VPU multiply + lane reduction instead of an
    # N=1 MXU matmul.  concat(h1, x2) @ W2^T  ==  h1.w2h + x2.w2p
    z2 = (jnp.sum(h1 * w2h_ref[...], axis=-1, keepdims=True)
          + jnp.sum(x2_ref[...] * w2p_ref[...], axis=-1, keepdims=True)
          + b2_ref[...])
    out_ref[...] = z2.astype(out_ref.dtype)


# --------------------------------------------------------------------------- #
# Host-side wrapper
# --------------------------------------------------------------------------- #
def _choose_tile_b(B, target=1024):
    """Largest convenient batch tile that divides B (multiple of 8 sublanes)."""
    if B >= target and B % target == 0:
        return target
    for cand in (2048, 1024, 512, 256, 128, 64, 32, 16, 8):
        if cand <= B and B % cand == 0:
            return cand
    return B  # single full-extent block (still legal: block == full array dim)


def fcnn_forward(x1, x2, packed, *, tile_b=None, stream_dtype=jnp.bfloat16):
    """x1: (B, D_in) f32, x2: (B, p) f32 -> (B, 1) f32."""
    B, D_in = x1.shape
    p = x2.shape[1]
    Hp = packed["w1"].shape[1]

    if tile_b is None:
        tile_b = _choose_tile_b(B)
    assert B % tile_b == 0, (B, tile_b)
    n_tiles = B // tile_b

    # bf16 only on the HBM-streamed operand + MXU inputs; VPU math stays f32.
    x1s = x1.astype(stream_dtype)
    x2s = x2.astype(jnp.float32)
    w1s = packed["w1"].astype(stream_dtype)
    isz = jnp.dtype(stream_dtype).itemsize

    resident = lambda i: (0, 0)   # noqa: E731  (constant index map -> VMEM-resident)
    tiled = lambda i: (i, 0)      # noqa: E731

    # ---- pass 1: BN statistics (accumulator over the batch grid) ---------- #
    stats_grid = pltpu.PrefetchScalarGridSpec(
        num_scalar_prefetch=0,
        grid=(n_tiles,),
        in_specs=[
            pl.BlockSpec((tile_b, D_in), tiled),
            pl.BlockSpec((D_in, Hp), resident),
            pl.BlockSpec((1, Hp), resident),
        ],
        out_specs=[
            pl.BlockSpec((1, Hp), resident),
            pl.BlockSpec((1, Hp), resident),
        ],
    )
    mean, rstd = pl.pallas_call(
        functools.partial(_bn_stats_kernel, batch_size=B),
        out_shape=(jax.ShapeDtypeStruct((1, Hp), jnp.float32),
                   jax.ShapeDtypeStruct((1, Hp), jnp.float32)),
        grid_spec=stats_grid,
        compiler_params=pltpu.CompilerParams(
            dimension_semantics=("arbitrary",),      # accumulator lives across steps
            vmem_limit_bytes=_VMEM_LIMIT),
        cost_estimate=pl.CostEstimate(
            flops=2 * B * D_in * Hp + 4 * B * Hp,
            transcendentals=Hp,
            bytes_accessed=B * D_in * isz + D_in * Hp * isz + 3 * Hp * 4),
    )(x1s, w1s, packed["b1"])

    # ---- pass 2: normalize + ReLU + fc2 (no cross-step state) ------------- #
    apply_grid = pltpu.PrefetchScalarGridSpec(
        num_scalar_prefetch=0,
        grid=(n_tiles,),
        in_specs=[
            pl.BlockSpec((tile_b, D_in), tiled),
            pl.BlockSpec((tile_b, p), tiled),
            pl.BlockSpec((1, Hp), resident),   # mean
            pl.BlockSpec((1, Hp), resident),   # rstd
            pl.BlockSpec((D_in, Hp), resident),
            pl.BlockSpec((1, Hp), resident),   # b1
            pl.BlockSpec((1, Hp), resident),   # gamma
            pl.BlockSpec((1, Hp), resident),   # beta
            pl.BlockSpec((1, Hp), resident),   # w2h row
            pl.BlockSpec((1, p), resident),    # w2p row
            pl.BlockSpec((1, 1), resident),    # b2
        ],
        out_specs=pl.BlockSpec((tile_b, 1), tiled),
    )
    out = pl.pallas_call(
        _fcnn_apply_kernel,
        out_shape=jax.ShapeDtypeStruct((B, 1), jnp.float32),
        grid_spec=apply_grid,
        compiler_params=pltpu.CompilerParams(
            dimension_semantics=("parallel",),       # safe to shard across cores
            vmem_limit_bytes=_VMEM_LIMIT),
        cost_estimate=pl.CostEstimate(
            flops=2 * B * D_in * Hp + 8 * B * Hp + 4 * B * p,
            transcendentals=0,
            bytes_accessed=(B * D_in * isz + B * p * 4 + B * 4
                            + D_in * Hp * isz + 7 * Hp * 4)),
    )(x1s, x2s, mean, rstd, w1s, packed["b1"], packed["gamma"], packed["beta"],
      packed["w2h"], packed["w2p"], packed["b2"])
    return out


# --------------------------------------------------------------------------- #
# Parameters (PyTorch-layout) + packing (transpose + lane padding)
# --------------------------------------------------------------------------- #
def init_params(key, D_in, H, p):
    """Deterministic init mimicking nn.Linear default (uniform +-1/sqrt(fan_in))."""
    k1, k2, k3, k4 = jax.random.split(key, 4)
    lim1 = float(D_in) ** -0.5
    lim2 = float(H + p) ** -0.5
    return {
        "fc1_w": jax.random.uniform(k1, (H, D_in), jnp.float32, -lim1, lim1),
        "fc1_b": jax.random.uniform(k2, (H,), jnp.float32, -lim1, lim1),
        "bn_w": jnp.ones((H,), jnp.float32),
        "bn_b": jnp.zeros((H,), jnp.float32),
        "fc2_w": jax.random.uniform(k3, (1, H + p), jnp.float32, -lim2, lim2),
        "fc2_b": jax.random.uniform(k4, (1,), jnp.float32, -lim2, lim2),
    }


def pack_params(params):
    """Transpose to (in, out) layout and zero-pad H up to a 128-lane multiple."""
    H, D_in = params["fc1_w"].shape
    p = params["fc2_w"].shape[1] - H
    Hp = ((H + _LANE - 1) // _LANE) * _LANE

    def pad_row(v, n):  # (k,) -> (1, n) zero-padded
        return jnp.zeros((1, n), jnp.float32).at[0, :v.shape[0]].set(v)

    w1 = jnp.zeros((D_in, Hp), jnp.float32).at[:, :H].set(params["fc1_w"].T)
    return {
        "w1": w1,                                   # cast to stream dtype in wrapper
        "b1": pad_row(params["fc1_b"], Hp),
        "gamma": pad_row(params["bn_w"], Hp),
        "beta": pad_row(params["bn_b"], Hp),
        "w2h": pad_row(params["fc2_w"][0, :H], Hp),
        "w2p": pad_row(params["fc2_w"][0, H:], p),
        "b2": params["fc2_b"].reshape(1, 1).astype(jnp.float32),
    }


# --------------------------------------------------------------------------- #
# Pure-JAX reference (same math / same bf16 MXU inputs, unpadded params)
# --------------------------------------------------------------------------- #
def fcnn_reference(x1, x2, params, stream_dtype=jnp.bfloat16):
    z1 = jnp.dot(x1.astype(stream_dtype),
                 params["fc1_w"].astype(stream_dtype).T,
                 preferred_element_type=jnp.float32) + params["fc1_b"]
    mean = jnp.mean(z1, axis=0, keepdims=True)
    var = jnp.maximum(jnp.mean(z1 * z1, axis=0, keepdims=True) - mean * mean, 0.0)
    h1 = jnp.maximum((z1 - mean) * jax.lax.rsqrt(var + BN_EPS)
                     * params["bn_w"] + params["bn_b"], 0.0)
    h = jnp.concatenate([h1, x2], axis=1)
    return h @ params["fc2_w"].T + params["fc2_b"]


if __name__ == "__main__":
    B, D_in, H, p = 512, 16, 32, 4          # small demo shapes; 4 batch tiles
    key = jax.random.PRNGKey(0)
    kx1, kx2, kp = jax.random.split(key, 3)

    x1 = jax.random.normal(kx1, (B, D_in), jnp.float32)
    x2 = jax.random.normal(kx2, (B, p), jnp.float32)
    params = init_params(kp, D_in, H, p)
    packed = pack_params(params)

    out = jax.block_until_ready(fcnn_forward(x1, x2, packed, tile_b=128))
    ref = fcnn_reference(x1, x2, params)

    assert out.shape == (B, 1)
    assert jnp.allclose(out, ref, atol=1e-3, rtol=1e-3), "mismatch vs JAX reference"
    print("KERNEL_OK")
</pallas_src>

<mosaic_0001>
module attributes {stable_mosaic.version = 11 : i64} {
  func.func @_bn_stats_kernel(%arg0: i32, %arg1: memref<128x16xbf16, #tpu.memory_space<vmem>>, %arg2: memref<16x128xbf16, #tpu.memory_space<vmem>>, %arg3: memref<1x128xf32, #tpu.memory_space<vmem>>, %arg4: memref<1x128xf32, #tpu.memory_space<vmem>>, %arg5: memref<1x128xf32, #tpu.memory_space<vmem>>) attributes {dimension_semantics = [#tpu.dimension_semantics<arbitrary>], iteration_bounds = array<i64: 4>, scalar_prefetch = 0 : i64, scratch_operands = 0 : i64, tpu.core_type = #tpu.core_type<tc>, window_params = [{transform_indices = @transform_0, window_bounds = array<i64: 128, 16>}, {pipeline_mode = #tpu.pipeline_mode<synchronous>, transform_indices = @transform_1, window_bounds = array<i64: 16, 128>}, {pipeline_mode = #tpu.pipeline_mode<synchronous>, transform_indices = @transform_2, window_bounds = array<i64: 1, 128>}, {pipeline_mode = #tpu.pipeline_mode<synchronous>, transform_indices = @transform_3, window_bounds = array<i64: 1, 128>}, {pipeline_mode = #tpu.pipeline_mode<synchronous>, transform_indices = @transform_4, window_bounds = array<i64: 1, 128>}]} {
    %c0_i32 = arith.constant 0 : i32
    %0 = arith.cmpi eq, %arg0, %c0_i32 : i32
    %1 = arith.extui %0 : i1 to i32
    %c0_i32_0 = arith.constant 0 : i32
    %2 = arith.cmpi ne, %1, %c0_i32_0 : i32
    scf.if %2 {
      %cst_17 = arith.constant 0.000000e+00 : f32
      %23 = vector.broadcast %cst_17 : f32 to vector<1x128xf32>
      %c0_18 = arith.constant 0 : index
      %c0_19 = arith.constant 0 : index
      %24 = vector.load %arg4[%c0_18, %c0_19] : memref<1x128xf32, #tpu.memory_space<vmem>>, vector<1x128xf32>
      tpu.vector_store %arg4[%c0_18, %c0_19], %23 {strides = array<i32>} : memref<1x128xf32, #tpu.memory_space<vmem>>, vector<1x128xf32>,
      %cst_20 = arith.constant 0.000000e+00 : f32
      %25 = vector.broadcast %cst_20 : f32 to vector<1x128xf32>
      %c0_21 = arith.constant 0 : index
      %c0_22 = arith.constant 0 : index
      %26 = vector.load %arg5[%c0_21, %c0_22] : memref<1x128xf32, #tpu.memory_space<vmem>>, vector<1x128xf32>
      tpu.vector_store %arg5[%c0_21, %c0_22], %25 {strides = array<i32>} : memref<1x128xf32, #tpu.memory_space<vmem>>, vector<1x128xf32>,
    } else {
    }
    %c0 = arith.constant 0 : index
    %c0_1 = arith.constant 0 : index
    %3 = vector.load %arg1[%c0, %c0_1] : memref<128x16xbf16, #tpu.memory_space<vmem>>, vector<128x16xbf16>
    %c0_2 = arith.constant 0 : index
    %c0_3 = arith.constant 0 : index
    %4 = vector.load %arg2[%c0_2, %c0_3] : memref<16x128xbf16, #tpu.memory_space<vmem>>, vector<16x128xbf16>
    %cst = arith.constant dense<0.000000e+00> : vector<128x128xf32>
    %5 = tpu.matmul %3, %4, %cst {dimension_numbers = #tpu.dot_dimension_numbers<[1], [0], [0], [1], [0, 0, 1, 1], [], []>} : vector<128x16xbf16>, vector<16x128xbf16>, vector<128x128xf32> -> vector<128x128xf32>
    %c0_4 = arith.constant 0 : index
    %c0_5 = arith.constant 0 : index
    %6 = vector.load %arg3[%c0_4, %c0_5] : memref<1x128xf32, #tpu.memory_space<vmem>>, vector<1x128xf32>
    %7 = vector.broadcast %6 : vector<1x128xf32> to vector<128x128xf32>
    %8 = arith.addf %5, %7 : vector<128x128xf32>
    %c0_6 = arith.constant 0 : index
    %c0_7 = arith.constant 0 : index
    %9 = vector.load %arg4[%c0_6, %c0_7] : memref<1x128xf32, #tpu.memory_space<vmem>>, vector<1x128xf32>
    %cst_8 = arith.constant dense<0.000000e+00> : vector<128xf32>
    %10 = vector.multi_reduction <add>, %8, %cst_8 [0] : vector<128x128xf32> to vector<128xf32>
    %11 = vector.shape_cast %10 : vector<128xf32> to vector<1x128xf32>
    %12 = arith.addf %9, %11 : vector<1x128xf32>
    %c0_9 = arith.constant 0 : index
    %c0_10 = arith.constant 0 : index
    %13 = vector.load %arg4[%c0_9, %c0_10] : memref<1x128xf32, #tpu.memory_space<vmem>>, vector<1x128xf32>
    tpu.vector_store %arg4[%c0_9, %c0_10], %12 {strides = array<i32>} : memref<1x128xf32, #tpu.memory_space<vmem>>, vector<1x128xf32>,
    %c0_11 = arith.constant 0 : index
    %c0_12 = arith.constant 0 : index
    %14 = vector.load %arg5[%c0_11, %c0_12] : memref<1x128xf32, #tpu.memory_space<vmem>>, vector<1x128xf32>
    %15 = arith.mulf %8, %8 : vector<128x128xf32>
    %cst_13 = arith.constant dense<0.000000e+00> : vector<128xf32>
    %16 = vector.multi_reduction <add>, %15, %cst_13 [0] : vector<128x128xf32> to vector<128xf32>
    %17 = vector.shape_cast %16 : vector<128xf32> to vector<1x128xf32>
    %18 = arith.addf %14, %17 : vector<1x128xf32>
    %c0_14 = arith.constant 0 : index
    %c0_15 = arith.constant 0 : index
    %19 = vector.load %arg5[%c0_14, %c0_15] : memref<1x128xf32, #tpu.memory_space<vmem>>, vector<1x128xf32>
    tpu.vector_store %arg5[%c0_14, %c0_15], %18 {strides = array<i32>} : memref<1x128xf32, #tpu.memory_space<vmem>>, vector<1x128xf32>,
    %c3_i32 = arith.constant 3 : i32
    %20 = arith.cmpi eq, %arg0, %c3_i32 : i32
    %21 = arith.extui %20 : i1 to i32
    %c0_i32_16 = arith.constant 0 : i32
    %22 = arith.cmpi ne, %21, %c0_i32_16 : i32
    scf.if %22 {
      %c0_17 = arith.constant 0 : index
      %c0_18 = arith.constant 0 : index
      %23 = vector.load %arg4[%c0_17, %c0_18] : memref<1x128xf32, #tpu.memory_space<vmem>>, vector<1x128xf32>
      %cst_19 = arith.constant 0.001953125 : f32
      %24 = vector.broadcast %cst_19 : f32 to vector<1x128xf32>
      %25 = arith.mulf %23, %24 : vector<1x128xf32>
      %c0_20 = arith.constant 0 : index
      %c0_21 = arith.constant 0 : index
      %26 = vector.load %arg5[%c0_20, %c0_21] : memref<1x128xf32, #tpu.memory_space<vmem>>, vector<1x128xf32>
      %cst_22 = arith.constant 0.001953125 : f32
      %27 = vector.broadcast %cst_22 : f32 to vector<1x128xf32>
      %28 = arith.mulf %26, %27 : vector<1x128xf32>
      %29 = arith.mulf %25, %25 : vector<1x128xf32>
      %30 = arith.subf %28, %29 : vector<1x128xf32>
      %cst_23 = arith.constant 0.000000e+00 : f32
      %31 = vector.broadcast %cst_23 : f32 to vector<1x128xf32>
      %32 = arith.maximumf %30, %31 : vector<1x128xf32>
      %c0_24 = arith.constant 0 : index
      %c0_25 = arith.constant 0 : index
      %33 = vector.load %arg4[%c0_24, %c0_25] : memref<1x128xf32, #tpu.memory_space<vmem>>, vector<1x128xf32>
      tpu.vector_store %arg4[%c0_24, %c0_25], %25 {strides = array<i32>} : memref<1x128xf32, #tpu.memory_space<vmem>>, vector<1x128xf32>,
      %cst_26 = arith.constant 9.99999974E-6 : f32
      %34 = vector.broadcast %cst_26 : f32 to vector<1x128xf32>
      %35 = arith.addf %32, %34 : vector<1x128xf32>
      %36 = math.rsqrt %35 : vector<1x128xf32>
      %c0_27 = arith.constant 0 : index
      %c0_28 = arith.constant 0 : index
      %37 = vector.load %arg5[%c0_27, %c0_28] : memref<1x128xf32, #tpu.memory_space<vmem>>, vector<1x128xf32>
      tpu.vector_store %arg5[%c0_27, %c0_28], %36 {strides = array<i32>} : memref<1x128xf32, #tpu.memory_space<vmem>>, vector<1x128xf32>,
    } else {
    }
    return
  }
  func.func @transform_0(%arg0: i32) -> (i32, i32) {
    %c0_i32 = arith.constant 0 : i32
    %c0_i32_0 = arith.constant 0 : i32
    return %arg0, %c0_i32 : i32, i32
  }
  func.func @transform_1(%arg0: i32) -> (i32, i32) {
    %c0_i32 = arith.constant 0 : i32
    %c0_i32_0 = arith.constant 0 : i32
    %c0_i32_1 = arith.constant 0 : i32
    return %c0_i32, %c0_i32_0 : i32, i32
  }
  func.func @transform_2(%arg0: i32) -> (i32, i32) {
    %c0_i32 = arith.constant 0 : i32
    %c0_i32_0 = arith.constant 0 : i32
    %c0_i32_1 = arith.constant 0 : i32
    return %c0_i32, %c0_i32_0 : i32, i32
  }
  func.func @transform_3(%arg0: i32) -> (i32, i32) {
    %c0_i32 = arith.constant 0 : i32
    %c0_i32_0 = arith.constant 0 : i32
    %c0_i32_1 = arith.constant 0 : i32
    return %c0_i32, %c0_i32_0 : i32, i32
  }
  func.func @transform_4(%arg0: i32) -> (i32, i32) {
    %c0_i32 = arith.constant 0 : i32
    %c0_i32_0 = arith.constant 0 : i32
    %c0_i32_1 = arith.constant 0 : i32
    return %c0_i32, %c0_i32_0 : i32, i32
  }
}

</mosaic_0001>

<llo_original>
// kernel: tpu_custom_call.1
$region0: #{tpu_custom_call.1}
  #allocation0 [shape = 'u32[]', space=smem, size = 0x4, offset = 0x4, fixed_abs, tag = 'smem constant byte address 0x4 - core index']
  #allocation1 [shape = 'u32[144,128]{1,0:T(1,128)}', space=vmem, size = 0x12000, scoped, tag = 'internal scratch']
  %s0 = inlined_call_operand.vmem [shape: bf16[512,16], index: 0, kind: input, shape index: {}]
  %s1 = inlined_call_operand.vmem [shape: bf16[16,128], index: 1, kind: input, shape index: {}]
  %s2 = inlined_call_operand.vmem [shape: f32[1,128], index: 2, kind: input, shape index: {}]
  %s3 = inlined_call_operand.hbm [shape: f32[1,128], index: 3, kind: output, shape index: {0}]
  %s4 = inlined_call_operand.hbm [shape: f32[1,128], index: 4, kind: output, shape index: {1}]
  %5 = xla_tuple %s3, %s4
  %s6 = sld [smem:[#allocation0]]
  $region61: #{tpu_custom_call.1} parent=0
    _
  %s8 = ssub.s32 1, %s6
  %s9 = scalar_select 0, %s8, %s6
  $region1: #{tpu_custom_call.1} parent=0
    #allocation2 [shape = 'u8[512]{0}', space=vmem, size = 0x400, scoped, tag = 'output window, operand 0, single buffered']
    #allocation3 [shape = 's32[2]{0}', space=sflag, size = 0x8, scoped, tag = 'scoped memory for tpu_custom_call.1']
    #allocation4 [shape = 'u8[512]{0}', space=vmem, size = 0x400, scoped, tag = 'output window, operand 1, single buffered']
    #allocation5 [shape = 's32[1]{0}', space=sflag, size = 0x4, scoped, tag = 'scoped memory for tpu_custom_call.1']
    %10 = vsyncpa [#allocation3], 0
    %11 = vsyncpa [#allocation5], 0
    loop: start=0, step=1, limit=6
    $region2: #{tpu_custom_call.1} parent=1 // loop_pre_header
      _
    $region3: #{tpu_custom_call.1} parent=1 // loop_header
      %s13 = sphi 0, %s17
      %p14 = scmp.ge.s32.totalorder %s13, 6
      %s23 = sphi 0, %s25
      %s26 = sphi 0, %s23
      %s27 = sphi 0, %s26
      %s43 = sphi 0, %s27
      %s47 = sphi 0, %s47
      %s49 = sphi 0, %s47
      %s50 = sphi 0, %s49
      %s64 = sphi 0, %s50
      %s68 = sphi 0, %s68
      %s70 = sphi 0, %s68
      %s71 = sphi 0, %s70
      %s85 = sphi 0, %s71
      %s89 = sphi 0, %s89
      %s91 = sphi 0, %s89
      %s92 = sphi 0, %s91
      %s106 = sphi 0, %s92
      %s110 = sphi 0, %s110
      %s112 = sphi 0, %s110
      %s113 = sphi 0, %s112
      %s127 = sphi 0, %s113
    $region4: #{tpu_custom_call.1} parent=1 // loop_header_branch
      %16 = sbr.rel (%p14) target = $region8
    $region5: #{tpu_custom_call.1} parent=1 // loop_body
      %s18 = ssub.s32 %s13, 1
      %s19 = ssub.s32 %s13, 2
      %s20 = sadd.s32 %s13, 1
      %s21 = ssub.s32 %s13, %s20
      %p22 = scmp.eq.s32.totalorder %s21, 0
      %s24 = sadd.s32 %s23, 1
      %s25 = scalar_select %p22, %s23, %s24
      %p28 = pneg %p22
      %p29 = scmp.eq.s32.totalorder %s13, 3
      %p30 = por %p28, %p29
      %p31 = scmp.ne.s32.totalorder %s23, %s26
      %p32 = scmp.eq.s32.totalorder %s13, 0
      %p33 = por %p31, %p32
      %p34 = scmp.ne.s32.totalorder %s23, %s26
      %p35 = scmp.eq.s32.totalorder %s18, 3
      %p36 = por %p34, %p35
      %p37 = scmp.ne.s32.totalorder %s26, %s27
      %p38 = scmp.eq.s32.totalorder %s18, 0
      %p39 = por %p37, %p38
      %p40 = scmp.ne.s32.totalorder %s26, %s27
      %p41 = scmp.eq.s32.totalorder %s19, 3
      %p42 = por %p40, %p41
      %p44 = scmp.ne.s32.totalorder %s27, %s43
      %p45 = scmp.eq.s32.totalorder %s19, 0
      %p46 = por %p44, %p45
      %s48 = sadd.s32 %s47, 1
      %p51 = scmp.eq.s32.totalorder %s13, 3
      %p52 = scmp.ne.s32.totalorder %s47, %s49
      %p53 = scmp.eq.s32.totalorder %s13, 0
      %p54 = por %p52, %p53
      %p55 = scmp.ne.s32.totalorder %s47, %s49
      %p56 = scmp.eq.s32.totalorder %s18, 3
      %p57 = por %p55, %p56
      %p58 = scmp.ne.s32.totalorder %s49, %s50
      %p59 = scmp.eq.s32.totalorder %s18, 0
      %p60 = por %p58, %p59
      %p61 = scmp.ne.s32.totalorder %s49, %s50
      %p62 = scmp.eq.s32.totalorder %s19, 3
      %p63 = por %p61, %p62
      %p65 = scmp.ne.s32.totalorder %s50, %s64
      %p66 = scmp.eq.s32.totalorder %s19, 0
      %p67 = por %p65, %p66
      %s69 = sadd.s32 %s68, 1
      %p72 = scmp.eq.s32.totalorder %s13, 3
      %p73 = scmp.ne.s32.totalorder %s68, %s70
      %p74 = scmp.eq.s32.totalorder %s13, 0
      %p75 = por %p73, %p74
      %p76 = scmp.ne.s32.totalorder %s68, %s70
      %p77 = scmp.eq.s32.totalorder %s18, 3
      %p78 = por %p76, %p77
      %p79 = scmp.ne.s32.totalorder %s70, %s71
      %p80 = scmp.eq.s32.totalorder %s18, 0
      %p81 = por %p79, %p80
      %p82 = scmp.ne.s32.totalorder %s70, %s71
      %p83 = scmp.eq.s32.totalorder %s19, 3
      %p84 = por %p82, %p83
      %p86 = scmp.ne.s32.totalorder %s71, %s85
      %p87 = scmp.eq.s32.totalorder %s19, 0
      %p88 = por %p86, %p87
      %s90 = sadd.s32 %s89, 1
      %p93 = scmp.eq.s32.totalorder %s13, 3
      %p94 = scmp.ne.s32.totalorder %s89, %s91
      %p95 = scmp.eq.s32.totalorder %s13, 0
      %p96 = por %p94, %p95
      %p97 = scmp.ne.s32.totalorder %s89, %s91
      %p98 = scmp.eq.s32.totalorder %s18, 3
      %p99 = por %p97, %p98
      %p100 = scmp.ne.s32.totalorder %s91, %s92
      %p101 = scmp.eq.s32.totalorder %s18, 0
      %p102 = por %p100, %p101
      %p103 = scmp.ne.s32.totalorder %s91, %s92
      %p104 = scmp.eq.s32.totalorder %s19, 3
      %p105 = por %p103, %p104
      %p107 = scmp.ne.s32.totalorder %s92, %s106
      %p108 = scmp.eq.s32.totalorder %s19, 0
      %p109 = por %p107, %p108
      %s111 = sadd.s32 %s110, 1
      %p114 = scmp.eq.s32.totalorder %s13, 3
      %p115 = scmp.ne.s32.totalorder %s110, %s112
      %p116 = scmp.eq.s32.totalorder %s13, 0
      %p117 = por %p115, %p116
      %p118 = scmp.ne.s32.totalorder %s110, %s112
      %p119 = scmp.eq.s32.totalorder %s18, 3
      %p120 = por %p118, %p119
      %p121 = scmp.ne.s32.totalorder %s112, %s113
      %p122 = scmp.eq.s32.totalorder %s18, 0
      %p123 = por %p121, %p122
      %p124 = scmp.ne.s32.totalorder %s112, %s113
      %p125 = scmp.eq.s32.totalorder %s19, 3
      %p126 = por %p124, %p125
      %p128 = scmp.ne.s32.totalorder %s113, %s127
      %p129 = scmp.eq.s32.totalorder %s19, 0
      %p130 = por %p128, %p129
      %p131 = scmp.le.s32.totalorder 1, %s13
      %p132 = scmp.lt.s32.totalorder %s13, 5
      %p133 = pnand %p131, %p132
      %p134 = pneg %p133
      // Predicated region
      $region9: #{tpu_custom_call.1} parent=5 // pred_check
        _
      $region10: #{tpu_custom_call.1} parent=5 // pred_check_branch
        %136 = sbr.rel (%p133) target = $region12
      $region11: #{tpu_custom_call.1} parent=5 // pred_region
        %s137 = ssub.s32 %s13, 1
        // Predicated region
        $region13: #{tpu_custom_call.1} parent=11 // pred_check
          %p138 = pneg %p60
        $region14: #{tpu_custom_call.1} parent=11 // pred_check_branch
          %140 = sbr.rel (%p138) target = $region16
        $region15: #{tpu_custom_call.1} parent=11 // pred_region
          _
        $region16: #{tpu_custom_call.1} parent=11 // pred_fallthru
          _
        // Predicated region
        $region17: #{tpu_custom_call.1} parent=11 // pred_check
          %p141 = pneg %p81
        $region18: #{tpu_custom_call.1} parent=11 // pred_check_branch
          %143 = sbr.rel (%p141) target = $region20
        $region19: #{tpu_custom_call.1} parent=11 // pred_region
          _
        $region20: #{tpu_custom_call.1} parent=11 // pred_fallthru
          _
      $region12: #{tpu_custom_call.1} parent=5 // pred_fallthru
        _
      %p144 = scmp.lt.s32.totalorder %s13, 4
      // Predicated region
      $region21: #{tpu_custom_call.1} parent=5 // pred_check
        %p145 = pneg %p144
      $region22: #{tpu_custom_call.1} parent=5 // pred_check_branch
        %147 = sbr.rel (%p145) target = $region24
      $region23: #{tpu_custom_call.1} parent=5 // pred_region
        // Predicated region
        $region25: #{tpu_custom_call.1} parent=23 // pred_check
          %p148 = pneg %p33
        $region26: #{tpu_custom_call.1} parent=23 // pred_check_branch
          %150 = sbr.rel (%p148) target = $region28
        $region27: #{tpu_custom_call.1} parent=23 // pred_region
          %s151 = smul.u32 16, %s13
          %p152 = scmp.lt.s32.totalorder %s151, 63
          %s153 = scalar_select %p152, %s151, 63
          %s154 = smul.addr %s153, 4
          %s155 = scalar_lea.vmem %s0, %s154
          %s156 = smul.u32 16, %s13
        $region28: #{tpu_custom_call.1} parent=23 // pred_fallthru
          _
      $region24: #{tpu_custom_call.1} parent=5 // pred_fallthru
        _
      %p157 = scmp.le.s32.totalorder 1, %s13
      %p158 = scmp.lt.s32.totalorder %s13, 5
      %p159 = pnand %p157, %p158
      %p160 = pneg %p159
      // Predicated region
      $region29: #{tpu_custom_call.1} parent=5 // pred_check
        _
      $region30: #{tpu_custom_call.1} parent=5 // pred_check_branch
        %162 = sbr.rel (%p159) target = $region32
      $region31: #{tpu_custom_call.1} parent=5 // pred_region
        %s163 = ssub.s32 %s13, 1
        %s164 = smul.u32 16, %s18
        %p165 = scmp.lt.s32.totalorder %s164, 63
        %s166 = scalar_select %p165, %s164, 63
        %s167 = smul.addr %s166, 4
        %s168 = scalar_lea.vmem %s0, %s167
        %p169 = pneg %p39
        %p170 = pneg %p36
        %p171 = pneg %p60
        %p172 = pneg %p57
        %p173 = pneg %p81
        %p174 = pneg %p78
        %p175 = pneg %p102
        %p176 = pneg %p99
        %p177 = pneg %p123
        %p178 = pneg %p120
        %s179 = smul.u32 16, %s18
        %p180 = scmp.lt.s32.totalorder %s179, 63
        %s181 = scalar_select %p180, %s179, 63
        %s182 = smul.addr %s181, 4
        %s183 = scalar_lea.vmem %s0, %s182
        %s184 = smul.u32 16, %s18
        %p186 = scmp.eq.s32.totalorder %s18, 0
        // Predicated region
        $region33: #{tpu_custom_call.1} parent=31 // pred_check
          %p187 = pneg %p186
        $region34: #{tpu_custom_call.1} parent=31 // pred_check_branch
          %189 = sbr.rel (%p187) target = $region36
        $region35: #{tpu_custom_call.1} parent=31 // pred_region
          %190 = vst [vmem:[#allocation2] sm:$0x1] 0.0
          %191 = vst [vmem:[#allocation4] sm:$0x1] 0.0
        $region36: #{tpu_custom_call.1} parent=31 // pred_fallthru
          _
        %v192 = vld [vmem:[%s183] sm:$0xf]
        %v193 = vld [vmem:[%s183 + $0x4] sm:$0xf]
        %v194 = vld [vmem:[%s183 + $0x8] sm:$0xf]
        %v195 = vld [vmem:[%s183 + $0xc] sm:$0xf]
        %v196 = vld [vmem:[%s183 + $0x10] sm:$0xf]
        %v197 = vld [vmem:[%s183 + $0x14] sm:$0xf]
        %v198 = vld [vmem:[%s183 + $0x18] sm:$0xf]
        %v199 = vld [vmem:[%s183 + $0x1c] sm:$0xf]
        %v200 = vld [vmem:[%s183 + $0x20] sm:$0xf]
        %v201 = vld [vmem:[%s183 + $0x24] sm:$0xf]
        %v202 = vld [vmem:[%s183 + $0x28] sm:$0xf]
        %v203 = vld [vmem:[%s183 + $0x2c] sm:$0xf]
        %v204 = vld [vmem:[%s183 + $0x30] sm:$0xf]
        %v205 = vld [vmem:[%s183 + $0x34] sm:$0xf]
        %v206 = vld [vmem:[%s183 + $0x38] sm:$0xf]
        %v207 = vld [vmem:[%s183 + $0x3c] sm:$0xf]
        %v208 = vld [vmem:[%s1] sm:$0xf]
        %v209 = vld [vmem:[%s1 + $0x4] sm:$0xf]
        %v210 = vld [vmem:[%s2] sm:$0x1]
        %v212 = vlaneseq
        %v213 = vshrl.u32 %v212, 7
        %v214 = vsub.s32 0, %v213
        %v215 = vrot.slane %v210, %v214
        %v233 = vunpack.c.l.b16 %v192
        %v234 = vunpack.c.l.b16 %v193
        %v235 = vunpack.c.l.b16 %v194
        %v236 = vunpack.c.l.b16 %v195
        %v237 = vunpack.c.l.b16 %v196
        %v238 = vunpack.c.l.b16 %v197
        %v239 = vunpack.c.l.b16 %v198
        %v240 = vunpack.c.l.b16 %v199
        %v241 = vunpack.c.l.b16 %v200
        %v242 = vunpack.c.l.b16 %v201
        %v243 = vunpack.c.l.b16 %v202
        %v244 = vunpack.c.l.b16 %v203
        %v245 = vunpack.c.l.b16 %v204
        %v246 = vunpack.c.l.b16 %v205
        %v247 = vunpack.c.l.b16 %v206
        %v248 = vunpack.c.l.b16 %v207
        %v249 = vpack.c.b16 %v234, %v233
        %v250 = vpack.c.b16 %v236, %v235
        %v251 = vpack.c.b16 %v238, %v237
        %v252 = vpack.c.b16 %v240, %v239
        %v253 = vpack.c.b16 %v242, %v241
        %v254 = vpack.c.b16 %v244, %v243
        %v255 = vpack.c.b16 %v246, %v245
        %v256 = vpack.c.b16 %v248, %v247
        %v259 = vunpack.c.l.b16 %v208
        %v260 = vunpack.c.l.b16 %v209
        %v261 = vpack.c.b16 %v260, %v259
        %vm263 = vcmask 130048
        %v265 = vsel %vm263, %v249, 0
        %v268 = vsel %vm263, %v250, 0
        %v271 = vsel %vm263, %v251, 0
        %v274 = vsel %vm263, %v252, 0
        %v277 = vsel %vm263, %v253, 0
        %v280 = vsel %vm263, %v254, 0
        %v283 = vsel %vm263, %v255, 0
        %v286 = vsel %vm263, %v256, 0
        %288 = vmatprep.subr.bf16.mxu0 0
        %289 = vmatpush1.bf16.msra.mxu0 0
        %290 = vmatprep.subr.bf16.mxu0 0
        %291 = vmatpush1.bf16.msra.mxu0 0
        %292 = vmatprep.subr.bf16.mxu0 0
        %293 = vmatpush1.bf16.msra.mxu0 0
        %294 = vmatprep.subr.bf16.mxu0 0
        %295 = vmatpush1.bf16.msra.mxu0 0
        %296 = vmatprep.subr.bf16.mxu0 0
        %297 = vmatpush1.bf16.msra.mxu0 0
        %298 = vmatprep.subr.bf16.mxu0 0
        %299 = vmatpush1.bf16.msra.mxu0 0
        %300 = vmatprep.subr.bf16.mxu0 0
        %301 = vmatpush1.bf16.msra.mxu0 0
        %302 = vmatprep.subr.bf16.mxu0 0
        %303 = vmatpush1.bf16.msra.mxu0 %v261
        %304 = vmatprep.subr.bf16.mxu0 0
        %305 = vmatpush2.bf16.msra.mxu0 0
        %306 = vmatprep.subr.bf16.mxu0 0
        %307 = vmatpush2.bf16.msra.mxu0 0
        %308 = vmatprep.subr.bf16.mxu0 0
        %309 = vmatpush2.bf16.msra.mxu0 0
        %310 = vmatprep.subr.bf16.mxu0 0
        %311 = vmatpush2.bf16.msra.mxu0 0
        %312 = vmatprep.subr.bf16.mxu0 0
        %313 = vmatpush2.bf16.msra.mxu0 0
        %314 = vmatprep.subr.bf16.mxu0 0
        %315 = vmatpush2.bf16.msra.mxu0 0
        %316 = vmatprep.subr.bf16.mxu0 0
        %317 = vmatpush2.bf16.msra.mxu0 0
        %318 = vmatprep.subr.bf16.mxu0 0
        %319 = vmatpush2.bf16.msra.mxu0 0
        %320 = vmatprep.mubr.bf16.mxu0 0
        %321 = vmatmul.mubr.bf16.gmra.mxu0 %v265
        %v322 = vpop.f32.mrf.mxu0
        %v323 = vadd.f32 %v215, %v322
        %v324 = vpop.f32.mrf.mxu0
        %v325 = vpop.f32.mrf.mxu0
        %v326 = vadd.f32 %v215, %v325
        %v327 = vpop.f32.mrf.mxu0
        %328 = vmatprep.mubr.bf16.mxu0 0
        %329 = vmatmul.mubr.bf16.gmra.mxu0 %v268
        %v330 = vpop.f32.mrf.mxu0
        %v331 = vadd.f32 %v215, %v330
        %v332 = vpop.f32.mrf.mxu0
        %v333 = vpop.f32.mrf.mxu0
        %v334 = vadd.f32 %v215, %v333
        %v335 = vpop.f32.mrf.mxu0
        %336 = vmatprep.mubr.bf16.mxu0 0
        %337 = vmatmul.mubr.bf16.gmra.mxu0 %v271
        %v338 = vpop.f32.mrf.mxu0
        %v339 = vadd.f32 %v215, %v338
        %v340 = vpop.f32.mrf.mxu0
        %v341 = vpop.f32.mrf.mxu0
        %v342 = vadd.f32 %v215, %v341
        %v343 = vpop.f32.mrf.mxu0
        %344 = vmatprep.mubr.bf16.mxu0 0
        %345 = vmatmul.mubr.bf16.gmra.mxu0 %v274
        %v346 = vpop.f32.mrf.mxu0
        %v347 = vadd.f32 %v215, %v346
        %v348 = vpop.f32.mrf.mxu0
        %v349 = vpop.f32.mrf.mxu0
        %v350 = vadd.f32 %v215, %v349
        %v351 = vpop.f32.mrf.mxu0
        %352 = vmatprep.mubr.bf16.mxu0 0
        %353 = vmatmul.mubr.bf16.gmra.mxu0 %v277
        %v354 = vpop.f32.mrf.mxu0
        %v355 = vadd.f32 %v215, %v354
        %v356 = vpop.f32.mrf.mxu0
        %v357 = vpop.f32.mrf.mxu0
        %v358 = vadd.f32 %v215, %v357
        %v359 = vpop.f32.mrf.mxu0
        %360 = vmatprep.mubr.bf16.mxu0 0
        %361 = vmatmul.mubr.bf16.gmra.mxu0 %v280
        %v362 = vpop.f32.mrf.mxu0
        %v363 = vadd.f32 %v215, %v362
        %v364 = vpop.f32.mrf.mxu0
        %v365 = vpop.f32.mrf.mxu0
        %v366 = vadd.f32 %v215, %v365
        %v367 = vpop.f32.mrf.mxu0
        %368 = vmatprep.mubr.bf16.mxu0 0
        %369 = vmatmul.mubr.bf16.gmra.mxu0 %v283
        %v370 = vpop.f32.mrf.mxu0
        %v371 = vadd.f32 %v215, %v370
        %v372 = vpop.f32.mrf.mxu0
        %v373 = vpop.f32.mrf.mxu0
        %v374 = vadd.f32 %v215, %v373
        %v375 = vpop.f32.mrf.mxu0
        %376 = vmatprep.mubr.bf16.mxu0 0
        %377 = vmatmul.mubr.bf16.gmra.mxu0 %v286
        %v378 = vpop.f32.mrf.mxu0
        %v379 = vadd.f32 %v215, %v378
        %v380 = vpop.f32.mrf.mxu0
        %v381 = vpop.f32.mrf.mxu0
        %v382 = vadd.f32 %v215, %v381
        %v383 = vpop.f32.mrf.mxu0
        %384 = vdwg.mxu0
        %v385 = vld [vmem:[#allocation2] sm:$0x1]
        %v386 = vadd.f32 %v323, %v326
        %v387 = vadd.f32 %v386, %v331
        %v388 = vadd.f32 %v387, %v334
        %v389 = vadd.f32 %v388, %v339
        %v390 = vadd.f32 %v389, %v342
        %v391 = vadd.f32 %v390, %v347
        %v392 = vadd.f32 %v391, %v350
        %v393 = vadd.f32 %v392, %v355
        %v394 = vadd.f32 %v393, %v358
        %v395 = vadd.f32 %v394, %v363
        %v396 = vadd.f32 %v395, %v366
        %v397 = vadd.f32 %v396, %v371
        %v398 = vadd.f32 %v397, %v374
        %v399 = vadd.f32 %v398, %v379
        %v400 = vadd.f32 %v399, %v382
        %v401 = vrot.slane %v400, 4
        %v402 = vadd.f32 %v400, %v401
        %v403 = vrot.slane %v402, 2
        %v404 = vadd.f32 %v402, %v403
        %v405 = vrot.slane %v404, 1
        %v406 = vadd.f32 %v404, %v405
        %v407 = vadd.f32 %v385, %v406
        %408 = vst [vmem:[#allocation2] sm:$0x1] %v407
        %v409 = vld [vmem:[#allocation4] sm:$0x1]
        %v410 = vmul.f32 %v323, %v323
        %v411 = vmul.f32 %v326, %v326
        %v412 = vmul.f32 %v331, %v331
        %v413 = vmul.f32 %v334, %v334
        %v414 = vmul.f32 %v339, %v339
        %v415 = vmul.f32 %v342, %v342
        %v416 = vmul.f32 %v347, %v347
        %v417 = vmul.f32 %v350, %v350
        %v418 = vmul.f32 %v355, %v355
        %v419 = vmul.f32 %v358, %v358
        %v420 = vmul.f32 %v363, %v363
        %v421 = vmul.f32 %v366, %v366
        %v422 = vmul.f32 %v371, %v371
        %v423 = vmul.f32 %v374, %v374
        %v424 = vmul.f32 %v379, %v379
        %v425 = vmul.f32 %v382, %v382
        %v426 = vadd.f32 %v410, %v411
        %v427 = vadd.f32 %v426, %v412
        %v428 = vadd.f32 %v427, %v413
        %v429 = vadd.f32 %v428, %v414
        %v430 = vadd.f32 %v429, %v415
        %v431 = vadd.f32 %v430, %v416
        %v432 = vadd.f32 %v431, %v417
        %v433 = vadd.f32 %v432, %v418
        %v434 = vadd.f32 %v433, %v419
        %v435 = vadd.f32 %v434, %v420
        %v436 = vadd.f32 %v435, %v421
        %v437 = vadd.f32 %v436, %v422
        %v438 = vadd.f32 %v437, %v423
        %v439 = vadd.f32 %v438, %v424
        %v440 = vadd.f32 %v439, %v425
        %v441 = vrot.slane %v440, 4
        %v442 = vadd.f32 %v440, %v441
        %v443 = vrot.slane %v442, 2
        %v444 = vadd.f32 %v442, %v443
        %v445 = vrot.slane %v444, 1
        %v446 = vadd.f32 %v444, %v445
        %v447 = vadd.f32 %v409, %v446
        %448 = vst [vmem:[#allocation4] sm:$0x1] %v447
        %p449 = scmp.eq.s32.totalorder %s18, 3
        // Predicated region
        $region37: #{tpu_custom_call.1} parent=31 // pred_check
          %p450 = pneg %p449
        $region38: #{tpu_custom_call.1} parent=31 // pred_check_branch
          %452 = sbr.rel (%p450) target = $region40
        $region39: #{tpu_custom_call.1} parent=31 // pred_region
          %v453 = vld [vmem:[#allocation2] sm:$0x1]
          %v454 = vmul.f32 %v453, 0.001953125
          %v455 = vld [vmem:[#allocation4] sm:$0x1]
          %v456 = vmul.f32 %v455, 0.001953125
          %v457 = vmul.f32 %v454, %v454
          %v458 = vsub.f32 %v456, %v457
          %v459 = vmax.f32 %v458, 0.0
          %460 = vst [vmem:[#allocation2] sm:$0x1] %v454
          %v461 = vadd.f32 %v459, 1e-05
          %v462 = vrsqrt.pop %v461
          %463 = vst [vmem:[#allocation4] sm:$0x1] %v462
        $region40: #{tpu_custom_call.1} parent=31 // pred_fallthru
          _
        // Predicated region
        $region41: #{tpu_custom_call.1} parent=31 // pred_check
          %p464 = pneg %p99
        $region42: #{tpu_custom_call.1} parent=31 // pred_check_branch
          %466 = sbr.rel (%p464) target = $region44
        $region43: #{tpu_custom_call.1} parent=31 // pred_region
          %s468 = ssub.s32 16, 16
          %469 = vsyncadd [#allocation3], %s468
          %s471 = sshll.u32 [#allocation2], 4
          %s472 = int_to_ptr.vmem [resolvable:$true] %s471
          %474 = dma.vmem_to_hbm [thread:$0]  %s472, 16, %s3, [#allocation3]
        $region44: #{tpu_custom_call.1} parent=31 // pred_fallthru
          _
        // Predicated region
        $region45: #{tpu_custom_call.1} parent=31 // pred_check
          %p475 = pneg %p120
        $region46: #{tpu_custom_call.1} parent=31 // pred_check_branch
          %477 = sbr.rel (%p475) target = $region48
        $region47: #{tpu_custom_call.1} parent=31 // pred_region
          %s479 = ssub.s32 16, 16
          %480 = vsyncadd [#allocation5], %s479
          %s482 = sshll.u32 [#allocation4], 4
          %s483 = int_to_ptr.vmem [resolvable:$true] %s482
          %485 = dma.vmem_to_hbm [thread:$0]  %s483, 16, %s4, [#allocation5]
        $region48: #{tpu_custom_call.1} parent=31 // pred_fallthru
          _
        // Predicated region
        $region49: #{tpu_custom_call.1} parent=31 // pred_check
          %p486 = pneg %p99
        $region50: #{tpu_custom_call.1} parent=31 // pred_check_branch
          %488 = sbr.rel (%p486) target = $region52
        $region51: #{tpu_custom_call.1} parent=31 // pred_region
          %489 = dma.done [#allocation3], 16
        $region52: #{tpu_custom_call.1} parent=31 // pred_fallthru
          _
        // Predicated region
        $region53: #{tpu_custom_call.1} parent=31 // pred_check
          %p490 = pneg %p120
        $region54: #{tpu_custom_call.1} parent=31 // pred_check_branch
          %492 = sbr.rel (%p490) target = $region56
        $region55: #{tpu_custom_call.1} parent=31 // pred_region
          %493 = dma.done [#allocation5], 16
        $region56: #{tpu_custom_call.1} parent=31 // pred_fallthru
          _
      $region32: #{tpu_custom_call.1} parent=5 // pred_fallthru
        _
      %p494 = scmp.le.s32.totalorder 2, %s13
      // Predicated region
      $region57: #{tpu_custom_call.1} parent=5 // pred_check
        %p495 = pneg %p494
      $region58: #{tpu_custom_call.1} parent=5 // pred_check_branch
        %497 = sbr.rel (%p495) target = $region60
      $region59: #{tpu_custom_call.1} parent=5 // pred_region
        %s498 = ssub.s32 %s13, 2
      $region60: #{tpu_custom_call.1} parent=5 // pred_fallthru
        _
    $region6: #{tpu_custom_call.1} parent=1 // loop_footer
      %s17 = sadd.s32 1, %s13
    $region7: #{tpu_custom_call.1} parent=1 // loop_footer_branch
      %12 = sbr.rel target = $region3
    $region8: #{tpu_custom_call.1} parent=1 // loop_exit
      _
    %499 = vsyncpa [#allocation3], 1
    %s500 = scalar_lea.sflag [#allocation3], 1
    %501 = vsyncpa %s500, 1
    %502 = vsyncpa [#allocation5], 1

</llo_original>
